<compile_context>
chip_gen: v7x
topology: tpu7x:2x2x1
jax: 0.10.0
libtpu: 0.0.40
codegen_flags: <defaults>
</compile_context>

<pallas_src>
import functools

import jax
import jax.numpy as jnp
from jax import lax
from jax.experimental import pallas as pl
from jax.experimental.pallas import tpu as pltpu

BN_EPS = 1e-5        # nn.BatchNorm1d default eps
NORM_EPS = 1e-12     # F.normalize default eps
LANE = 128
NC = 2               # leading "parallel" axis of the two-pass fallback
                     # (feeds both v7x TensorCores; harmless on 1-TC chips)


def _round_up(x, m):
    return ((x + m - 1) // m) * m


def _vmem_capacity_bytes():
    try:
        return int(pltpu.get_tpu_info().vmem_capacity_bytes)
    except Exception:
        return 64 * 1024 * 1024          # conservative (v7x per-core VMEM)


def _pick_tile_b(batch, dp, fp):
    # ~2 MiB of f32 per (tile_b, dp)+(tile_b, fp) tile pair: big enough to
    # amortize the ~0.35us/step cost and saturate HBM, small enough to leave
    # VMEM for the (single-buffered) weights even on v7x.
    target = max(128, (2 * 2 ** 20) // (4 * (dp + fp)))
    target = _round_up(target, 8)
    return min(target, _round_up(batch, 8))


def _pad2(a, rows, cols):
    r, c = a.shape
    return jnp.pad(a, ((0, rows - r), (0, cols - c)))


def _const_spec(shape, index_map):
    """Constant-index operand: single-buffer it (index never changes, so the
    default double buffering would just waste VMEM)."""
    if hasattr(pl, "Buffered"):
        try:
            return pl.BlockSpec(shape, index_map, pipeline_mode=pl.Buffered(1))
        except TypeError:
            pass
    return pl.BlockSpec(shape, index_map)


# --------------------------- fused single kernel -----------------------------
def _fused_kernel(x_ref, w1t_ref, b1_ref, g_ref, be_ref, w2t_ref, b2_ref,
                  o_ref, h_scr, sum_scr, sq_scr, scale_scr, shift_scr,
                  *, inv_batch, rows_valid, tile_b, mask_rows):
    """grid = (2, nb).  Phase 0: h = relu(x @ W1^T + b1) into a resident VMEM
    scratch + BN sum/sumsq.  Phase 1: BN scale/shift (computed once at j==0),
    Linear2, fused rsqrt L2-normalize.  h never touches HBM."""
    p = pl.program_id(0)
    j = pl.program_id(1)

    @pl.when(p == 0)
    def _phase0():
        h = lax.dot_general(x_ref[...], w1t_ref[...],
                            dimension_numbers=(((1,), (0,)), ((), ())),
                            preferred_element_type=jnp.float32)
        h = jnp.maximum(h + b1_ref[...], 0.0)
        if mask_rows:   # zero rows past the true batch so BN stats stay exact
            row = j * tile_b + lax.broadcasted_iota(jnp.int32, (tile_b, 1), 0)
            h = jnp.where(row < rows_valid, h, 0.0)
        h_scr[j] = h.astype(h_scr.dtype)
        s = jnp.sum(h, axis=0, keepdims=True)          # (1, dp)
        q = jnp.sum(h * h, axis=0, keepdims=True)      # (1, dp)

        @pl.when(j == 0)
        def _():
            sum_scr[...] = s
            sq_scr[...] = q

        @pl.when(j != 0)
        def _():
            sum_scr[...] += s
            sq_scr[...] += q

    @pl.when(p == 1)
    def _phase1():
        @pl.when(j == 0)
        def _():
            mean = sum_scr[...] * inv_batch
            var = jnp.maximum(sq_scr[...] * inv_batch - mean * mean, 0.0)
            inv_std = lax.rsqrt(var + BN_EPS)
            scale_scr[...] = g_ref[...] * inv_std
            shift_scr[...] = be_ref[...] - mean * scale_scr[...]

        hn = h_scr[j].astype(jnp.float32) * scale_scr[...] + shift_scr[...]
        y = lax.dot_general(hn.astype(w2t_ref.dtype), w2t_ref[...],
                            dimension_numbers=(((1,), (0,)), ((), ())),
                            preferred_element_type=jnp.float32) + b2_ref[...]
        # F.normalize(dim=1): y * rsqrt(max(sum(y^2), eps^2))
        ss = jnp.sum(y * y, axis=1, keepdims=True)
        o_ref[...] = (y * lax.rsqrt(jnp.maximum(ss, NORM_EPS * NORM_EPS))
                      ).astype(o_ref.dtype)


# ------------------- two-pass fallback: pass 1 and pass 2 --------------------
def _pass1_kernel(x_ref, w1t_ref, b1_ref, h_ref, psum_ref, psq_ref,
                  *, tile_b, rows_valid, mask_rows, nbc):
    """grid = (NC, nbc), outer axis "parallel".  Each core writes its own
    8-row partial-sum slab (per-core partials => no race under megacore)."""
    c = pl.program_id(0)
    j = pl.program_id(1)
    h = lax.dot_general(x_ref[...], w1t_ref[...],
                        dimension_numbers=(((1,), (0,)), ((), ())),
                        preferred_element_type=jnp.float32)
    h = jnp.maximum(h + b1_ref[...], 0.0)
    if mask_rows:
        row = (c * nbc + j) * tile_b + lax.broadcasted_iota(
            jnp.int32, (tile_b, 1), 0)
        h = jnp.where(row < rows_valid, h, 0.0)
    h_ref[...] = h.astype(h_ref.dtype)
    s = jnp.sum(h, axis=0, keepdims=True)
    q = jnp.sum(h * h, axis=0, keepdims=True)

    @pl.when(j == 0)
    def _():
        psum_ref[...] = jnp.broadcast_to(s, psum_ref.shape)
        psq_ref[...] = jnp.broadcast_to(q, psq_ref.shape)

    @pl.when(j != 0)
    def _():
        psum_ref[...] += s
        psq_ref[...] += q


def _pass2_kernel(h_ref, w2e_ref, b2e_ref, o_ref):
    """BN already folded into (w2e, b2e): matmul + L2 normalize only."""
    y = lax.dot_general(h_ref[...].astype(w2e_ref.dtype), w2e_ref[...],
                        dimension_numbers=(((1,), (0,)), ((), ())),
                        preferred_element_type=jnp.float32) + b2e_ref[...]
    ss = jnp.sum(y * y, axis=1, keepdims=True)
    o_ref[...] = (y * lax.rsqrt(jnp.maximum(ss, NORM_EPS * NORM_EPS))
                  ).astype(o_ref.dtype)


# --------------------------------- wrapper -----------------------------------
def head_model_forward(x, w1, b1, gamma, beta, w2, b2, *,
                       mxu_dtype=jnp.float32, h_dtype=jnp.float32,
                       force_two_pass=False):
    """x: (B, dim_in).  w1: (dim_in, dim_in), w2: (feat_dim, dim_in) in PyTorch
    (out_features, in_features) layout.  mxu_dtype=jnp.bfloat16 gives ~2-3x MXU
    throughput (f32 accumulation kept) at ~1e-3 output error; h_dtype=bfloat16
    halves the h footprint / round-trip traffic.  Defaults keep f32 parity."""
    batch, dim_in = x.shape
    feat_dim = w2.shape[0]
    f32 = jnp.float32

    dp = _round_up(dim_in, LANE)      # lane-dense hidden / contraction dim
    fp = _round_up(feat_dim, LANE)    # lane-dense output dim

    # Pad + pre-transpose weights ONCE (amortized over every batch tile).
    # Zero-padded b1/gamma/beta keep padded hidden columns exactly 0 through
    # ReLU and BN, so the padded math is exact vs the unpadded module.
    w1t = jnp.pad(w1.astype(f32), ((0, dp - dim_in), (0, dp - dim_in))).T
    w2t = jnp.pad(w2.astype(f32), ((0, fp - feat_dim), (0, dp - dim_in))).T
    b1_p = jnp.pad(b1.astype(f32), (0, dp - dim_in)).reshape(1, dp)
    g_p = jnp.pad(gamma.astype(f32), (0, dp - dim_in)).reshape(1, dp)
    be_p = jnp.pad(beta.astype(f32), (0, dp - dim_in)).reshape(1, dp)
    b2_p = jnp.pad(b2.astype(f32), (0, fp - feat_dim)).reshape(1, fp)

    vmem_limit = int(min(_vmem_capacity_bytes() * 3 // 4, 100 * 2 ** 20))
    tile_b = _pick_tile_b(batch, dp, fp)
    itm = jnp.dtype(mxu_dtype).itemsize
    ith = jnp.dtype(h_dtype).itemsize

    # ------------- fused single-kernel path (h never leaves VMEM) -----------
    b_pad = _round_up(batch, tile_b)
    nb = b_pad // tile_b
    fused_vmem = (b_pad * dp * ith                 # resident h scratch
                  + (dp * dp + dp * fp) * itm      # single-buffered weights
                  + 2 * tile_b * dp * itm          # x tile (double buffered)
                  + 2 * tile_b * fp * 4            # out tile (double buffered)
                  + 16 * dp * 4 + 2 * fp * 4)      # stats / bias / affine rows
    use_fused = (not force_two_pass) and fused_vmem <= int(0.9 * vmem_limit)

    if use_fused:
        mask_rows = b_pad != batch
        x_p = _pad2(x.astype(f32), b_pad, dp).astype(mxu_dtype)
        kern = functools.partial(_fused_kernel, inv_batch=1.0 / batch,
                                 rows_valid=batch, tile_b=tile_b,
                                 mask_rows=mask_rows)
        out_p = pl.pallas_call(
            kern,
            out_shape=jax.ShapeDtypeStruct((b_pad, fp), f32),
            grid=(2, nb),
            in_specs=[
                # x: real tiles in phase 0; parked on block 0 in phase 1
                pl.BlockSpec((tile_b, dp), lambda p, j: (j * (1 - p), 0)),
                _const_spec((dp, dp), lambda p, j: (0, 0)),    # W1^T
                _const_spec((1, dp), lambda p, j: (0, 0)),     # b1
                _const_spec((1, dp), lambda p, j: (0, 0)),     # gamma
                _const_spec((1, dp), lambda p, j: (0, 0)),     # beta
                _const_spec((dp, fp), lambda p, j: (0, 0)),    # W2^T
                _const_spec((1, fp), lambda p, j: (0, 0)),     # b2
            ],
            # phase 0 parks on block 0; phase-1 step 0 rewrites it before the
            # first writeback, so no garbage ever reaches HBM.
            out_specs=pl.BlockSpec((tile_b, fp), lambda p, j: (j * p, 0)),
            scratch_shapes=[
                pltpu.VMEM((nb, tile_b, dp), h_dtype),               # h
                pltpu.VMEM((1, dp), f32), pltpu.VMEM((1, dp), f32),  # sum/sq
                pltpu.VMEM((1, dp), f32), pltpu.VMEM((1, dp), f32),  # scale/shift
            ],
            compiler_params=pltpu.CompilerParams(
                dimension_semantics=("arbitrary", "arbitrary"),
                vmem_limit_bytes=vmem_limit),
            cost_estimate=pl.CostEstimate(
                flops=2 * b_pad * dp * (dp + fp) + 8 * b_pad * (dp + fp),
                transcendentals=b_pad + dp,
                bytes_accessed=4 * b_pad * (dp + fp) + itm * dp * (dp + fp)),
        )(x_p, w1t.astype(mxu_dtype), b1_p, g_p, be_p,
          w2t.astype(mxu_dtype), b2_p)

        if b_pad != batch or fp != feat_dim:
            out_p = out_p[:batch, :feat_dim]
        return out_p

    # ---------- two-pass fallback (batch*dim too large for VMEM) ------------
    b_pad = _round_up(batch, tile_b * NC)
    nb_total = b_pad // tile_b
    nbc = nb_total // NC
    mask_rows = b_pad != batch
    x_p = _pad2(x.astype(f32), b_pad, dp).astype(mxu_dtype)

    kern1 = functools.partial(_pass1_kernel, tile_b=tile_b, rows_valid=batch,
                              mask_rows=mask_rows, nbc=nbc)
    h_full, psum, psq = pl.pallas_call(
        kern1,
        out_shape=(jax.ShapeDtypeStruct((b_pad, dp), h_dtype),
                   jax.ShapeDtypeStruct((NC * 8, dp), f32),
                   jax.ShapeDtypeStruct((NC * 8, dp), f32)),
        grid=(NC, nbc),
        in_specs=[pl.BlockSpec((tile_b, dp), lambda c, j: (c * nbc + j, 0)),
                  _const_spec((dp, dp), lambda c, j: (0, 0)),
                  _const_spec((1, dp), lambda c, j: (0, 0))],
        out_specs=(pl.BlockSpec((tile_b, dp), lambda c, j: (c * nbc + j, 0)),
                   pl.BlockSpec((8, dp), lambda c, j: (c, 0)),
                   pl.BlockSpec((8, dp), lambda c, j: (c, 0))),
        compiler_params=pltpu.CompilerParams(
            dimension_semantics=("parallel", "arbitrary"),   # 2 TCs on v7x
            vmem_limit_bytes=vmem_limit),
        cost_estimate=pl.CostEstimate(
            flops=2 * b_pad * dp * dp + 4 * b_pad * dp,
            transcendentals=0,
            bytes_accessed=(itm + ith) * b_pad * dp + itm * dp * dp),
    )(x_p, w1t.astype(mxu_dtype), b1_p)

    # Reduce per-core partials + fold BN into the second linear (tiny XLA op):
    # pass 2 then only does matmul + normalize.
    col_sum = jnp.sum(psum[::8], axis=0, keepdims=True)     # one row per slab
    col_sq = jnp.sum(psq[::8], axis=0, keepdims=True)
    mean = col_sum / batch
    var = jnp.maximum(col_sq / batch - mean * mean, 0.0)
    inv_std = lax.rsqrt(var + BN_EPS)
    scale = g_p * inv_std
    shift = be_p - mean * scale
    w2e = (w2t * scale.reshape(dp, 1)).astype(mxu_dtype)     # (dp, fp)
    b2e = shift @ w2t + b2_p                                 # (1, fp)

    out_p = pl.pallas_call(
        _pass2_kernel,
        out_shape=jax.ShapeDtypeStruct((b_pad, fp), f32),
        grid=(nb_total,),
        in_specs=[pl.BlockSpec((tile_b, dp), lambda i: (i, 0)),
                  _const_spec((dp, fp), lambda i: (0, 0)),
                  _const_spec((1, fp), lambda i: (0, 0))],
        out_specs=pl.BlockSpec((tile_b, fp), lambda i: (i, 0)),
        compiler_params=pltpu.CompilerParams(
            dimension_semantics=("parallel",),
            vmem_limit_bytes=vmem_limit),
        cost_estimate=pl.CostEstimate(
            flops=2 * b_pad * dp * fp + 5 * b_pad * fp,
            transcendentals=b_pad,
            bytes_accessed=ith * b_pad * dp + 4 * b_pad * fp + itm * dp * fp),
    )(h_full, w2e, b2e)

    if b_pad != batch or fp != feat_dim:
        out_p = out_p[:batch, :feat_dim]
    return out_p


if __name__ == "__main__":
    # Small shapes consistent with the module: batch=8, dim_in=32, feat_dim=128
    B, DIM_IN, FEAT_DIM = 8, 32, 128

    key = jax.random.PRNGKey(0)
    kx, kw1, kb1, kw2, kb2 = jax.random.split(key, 5)

    x = jax.random.normal(kx, (B, DIM_IN), dtype=jnp.float32)

    # Deterministic parameter init (PyTorch Linear-like scale; BN affine = 1/0)
    bound1 = 1.0 / (DIM_IN ** 0.5)
    w1 = jax.random.uniform(kw1, (DIM_IN, DIM_IN), jnp.float32, -bound1, bound1)
    b1 = jax.random.uniform(kb1, (DIM_IN,), jnp.float32, -bound1, bound1)
    gamma = jnp.ones((DIM_IN,), jnp.float32)
    beta = jnp.zeros((DIM_IN,), jnp.float32)
    w2 = jax.random.uniform(kw2, (FEAT_DIM, DIM_IN), jnp.float32, -bound1, bound1)
    b2 = jax.random.uniform(kb2, (FEAT_DIM,), jnp.float32, -bound1, bound1)

    # Fused single-kernel path (the normal path at these shapes).
    out_fused = jax.block_until_ready(
        head_model_forward(x, w1, b1, gamma, beta, w2, b2))
    # Two-pass fallback path (forced, to also validate it on hardware).
    out_2pass = jax.block_until_ready(
        head_model_forward(x, w1, b1, gamma, beta, w2, b2, force_two_pass=True))

    # Pure-JAX reference (mirrors the PyTorch module in training mode)
    h = jnp.maximum(x @ w1.T + b1, 0.0)
    mu = h.mean(0, keepdims=True)
    vr = ((h - mu) ** 2).mean(0, keepdims=True)
    hn = (h - mu) / jnp.sqrt(vr + BN_EPS) * gamma + beta
    y = hn @ w2.T + b2
    ref = y / jnp.maximum(jnp.linalg.norm(y, axis=1, keepdims=True), NORM_EPS)

    assert out_fused.shape == (B, FEAT_DIM)
    assert out_2pass.shape == (B, FEAT_DIM)
    assert jnp.allclose(out_fused, ref, atol=1e-4, rtol=1e-4), "fused mismatch"
    assert jnp.allclose(out_2pass, ref, atol=1e-4, rtol=1e-4), "two-pass mismatch"

    print("KERNEL_OK")
</pallas_src>

<mosaic_0001>
module attributes {stable_mosaic.version = 11 : i64} {
  func.func @_fused_kernel(%arg0: i32, %arg1: i32, %arg2: memref<8x128xf32, #tpu.memory_space<vmem>>, %arg3: memref<128x128xf32, #tpu.memory_space<vmem>>, %arg4: memref<1x128xf32, #tpu.memory_space<vmem>>, %arg5: memref<1x128xf32, #tpu.memory_space<vmem>>, %arg6: memref<1x128xf32, #tpu.memory_space<vmem>>, %arg7: memref<128x128xf32, #tpu.memory_space<vmem>>, %arg8: memref<1x128xf32, #tpu.memory_space<vmem>>, %arg9: memref<8x128xf32, #tpu.memory_space<vmem>>, %arg10: memref<1x8x128xf32, #tpu.memory_space<vmem>>, %arg11: memref<1x128xf32, #tpu.memory_space<vmem>>, %arg12: memref<1x128xf32, #tpu.memory_space<vmem>>, %arg13: memref<1x128xf32, #tpu.memory_space<vmem>>, %arg14: memref<1x128xf32, #tpu.memory_space<vmem>>) attributes {dimension_semantics = [#tpu.dimension_semantics<arbitrary>, #tpu.dimension_semantics<arbitrary>], iteration_bounds = array<i64: 2, 1>, scalar_prefetch = 0 : i64, scratch_operands = 5 : i64, tpu.core_type = #tpu.core_type<tc>, window_params = [{transform_indices = @transform_0, window_bounds = array<i64: 8, 128>}, {pipeline_mode = #tpu.pipeline_mode<synchronous>, transform_indices = @transform_1, window_bounds = array<i64: 128, 128>}, {pipeline_mode = #tpu.pipeline_mode<synchronous>, transform_indices = @transform_2, window_bounds = array<i64: 1, 128>}, {pipeline_mode = #tpu.pipeline_mode<synchronous>, transform_indices = @transform_3, window_bounds = array<i64: 1, 128>}, {pipeline_mode = #tpu.pipeline_mode<synchronous>, transform_indices = @transform_4, window_bounds = array<i64: 1, 128>}, {pipeline_mode = #tpu.pipeline_mode<synchronous>, transform_indices = @transform_5, window_bounds = array<i64: 128, 128>}, {pipeline_mode = #tpu.pipeline_mode<synchronous>, transform_indices = @transform_6, window_bounds = array<i64: 1, 128>}, {transform_indices = @transform_7, window_bounds = array<i64: 8, 128>}]} {
    %c0_i32 = arith.constant 0 : i32
    %0 = arith.cmpi eq, %arg0, %c0_i32 : i32
    %1 = arith.extui %0 : i1 to i32
    %c0_i32_0 = arith.constant 0 : i32
    %2 = arith.cmpi ne, %1, %c0_i32_0 : i32
    scf.if %2 {
      %c0 = arith.constant 0 : index
      %c0_2 = arith.constant 0 : index
      %6 = vector.load %arg2[%c0, %c0_2] : memref<8x128xf32, #tpu.memory_space<vmem>>, vector<8x128xf32>
      %c0_3 = arith.constant 0 : index
      %c0_4 = arith.constant 0 : index
      %7 = vector.load %arg3[%c0_3, %c0_4] : memref<128x128xf32, #tpu.memory_space<vmem>>, vector<128x128xf32>
      %cst = arith.constant dense<0.000000e+00> : vector<8x128xf32>
      %8 = tpu.matmul %6, %7, %cst {dimension_numbers = #tpu.dot_dimension_numbers<[1], [0], [0], [1], [0, 0, 1, 1], [], []>} : vector<8x128xf32>, vector<128x128xf32>, vector<8x128xf32> -> vector<8x128xf32>
      %c0_5 = arith.constant 0 : index
      %c0_6 = arith.constant 0 : index
      %9 = vector.load %arg4[%c0_5, %c0_6] : memref<1x128xf32, #tpu.memory_space<vmem>>, vector<1x128xf32>
      %10 = vector.broadcast %9 : vector<1x128xf32> to vector<8x128xf32>
      %11 = arith.addf %8, %10 : vector<8x128xf32>
      %cst_7 = arith.constant 0.000000e+00 : f32
      %12 = vector.broadcast %cst_7 : f32 to vector<8x128xf32>
      %13 = arith.maximumf %11, %12 : vector<8x128xf32>
      %14 = arith.index_cast %arg1 : i32 to index
      %c0_8 = arith.constant 0 : index
      %c0_9 = arith.constant 0 : index
      %15 = vector.load %arg10[%14, %c0_8, %c0_9] : memref<1x8x128xf32, #tpu.memory_space<vmem>>, vector<1x8x128xf32>
      %16 = vector.shape_cast %15 : vector<1x8x128xf32> to vector<8x128xf32>
      %17 = vector.shape_cast %13 : vector<8x128xf32> to vector<1x8x128xf32>
      tpu.vector_store %arg10[%14, %c0_8, %c0_9], %17 {strides = array<i32>} : memref<1x8x128xf32, #tpu.memory_space<vmem>>, vector<1x8x128xf32>,
      %cst_10 = arith.constant dense<0.000000e+00> : vector<128xf32>
      %18 = vector.multi_reduction <add>, %13, %cst_10 [0] : vector<8x128xf32> to vector<128xf32>
      %19 = vector.shape_cast %18 : vector<128xf32> to vector<1x128xf32>
      %20 = arith.mulf %13, %13 : vector<8x128xf32>
      %cst_11 = arith.constant dense<0.000000e+00> : vector<128xf32>
      %21 = vector.multi_reduction <add>, %20, %cst_11 [0] : vector<8x128xf32> to vector<128xf32>
      %22 = vector.shape_cast %21 : vector<128xf32> to vector<1x128xf32>
      %c0_i32_12 = arith.constant 0 : i32
      %23 = arith.cmpi eq, %arg1, %c0_i32_12 : i32
      %24 = arith.extui %23 : i1 to i32
      %c0_i32_13 = arith.constant 0 : i32
      %25 = arith.cmpi ne, %24, %c0_i32_13 : i32
      scf.if %25 {
        %c0_16 = arith.constant 0 : index
        %c0_17 = arith.constant 0 : index
        %29 = vector.load %arg11[%c0_16, %c0_17] : memref<1x128xf32, #tpu.memory_space<vmem>>, vector<1x128xf32>
        tpu.vector_store %arg11[%c0_16, %c0_17], %19 {strides = array<i32>} : memref<1x128xf32, #tpu.memory_space<vmem>>, vector<1x128xf32>,
        %c0_18 = arith.constant 0 : index
        %c0_19 = arith.constant 0 : index
        %30 = vector.load %arg12[%c0_18, %c0_19] : memref<1x128xf32, #tpu.memory_space<vmem>>, vector<1x128xf32>
        tpu.vector_store %arg12[%c0_18, %c0_19], %22 {strides = array<i32>} : memref<1x128xf32, #tpu.memory_space<vmem>>, vector<1x128xf32>,
      } else {
      }
      %c0_i32_14 = arith.constant 0 : i32
      %26 = arith.cmpi ne, %arg1, %c0_i32_14 : i32
      %27 = arith.extui %26 : i1 to i32
      %c0_i32_15 = arith.constant 0 : i32
      %28 = arith.cmpi ne, %27, %c0_i32_15 : i32
      scf.if %28 {
        %c0_16 = arith.constant 0 : index
        %c0_17 = arith.constant 0 : index
        %29 = vector.load %arg11[%c0_16, %c0_17] : memref<1x128xf32, #tpu.memory_space<vmem>>, vector<1x128xf32>
        %30 = arith.addf %29, %19 : vector<1x128xf32>
        %c0_18 = arith.constant 0 : index
        %c0_19 = arith.constant 0 : index
        %31 = vector.load %arg11[%c0_18, %c0_19] : memref<1x128xf32, #tpu.memory_space<vmem>>, vector<1x128xf32>
        tpu.vector_store %arg11[%c0_18, %c0_19], %30 {strides = array<i32>} : memref<1x128xf32, #tpu.memory_space<vmem>>, vector<1x128xf32>,
        %c0_20 = arith.constant 0 : index
        %c0_21 = arith.constant 0 : index
        %32 = vector.load %arg12[%c0_20, %c0_21] : memref<1x128xf32, #tpu.memory_space<vmem>>, vector<1x128xf32>
        %33 = arith.addf %32, %22 : vector<1x128xf32>
        %c0_22 = arith.constant 0 : index
        %c0_23 = arith.constant 0 : index
        %34 = vector.load %arg12[%c0_22, %c0_23] : memref<1x128xf32, #tpu.memory_space<vmem>>, vector<1x128xf32>
        tpu.vector_store %arg12[%c0_22, %c0_23], %33 {strides = array<i32>} : memref<1x128xf32, #tpu.memory_space<vmem>>, vector<1x128xf32>,
      } else {
      }
    } else {
    }
    %c1_i32 = arith.constant 1 : i32
    %3 = arith.cmpi eq, %arg0, %c1_i32 : i32
    %4 = arith.extui %3 : i1 to i32
    %c0_i32_1 = arith.constant 0 : i32
    %5 = arith.cmpi ne, %4, %c0_i32_1 : i32
    scf.if %5 {
      %c0_i32_2 = arith.constant 0 : i32
      %6 = arith.cmpi eq, %arg1, %c0_i32_2 : i32
      %7 = arith.extui %6 : i1 to i32
      %c0_i32_3 = arith.constant 0 : i32
      %8 = arith.cmpi ne, %7, %c0_i32_3 : i32
      scf.if %8 {
        %c0_17 = arith.constant 0 : index
        %c0_18 = arith.constant 0 : index
        %32 = vector.load %arg11[%c0_17, %c0_18] : memref<1x128xf32, #tpu.memory_space<vmem>>, vector<1x128xf32>
        %cst_19 = arith.constant 1.250000e-01 : f32
        %33 = vector.broadcast %cst_19 : f32 to vector<1x128xf32>
        %34 = arith.mulf %32, %33 : vector<1x128xf32>
        %c0_20 = arith.constant 0 : index
        %c0_21 = arith.constant 0 : index
        %35 = vector.load %arg12[%c0_20, %c0_21] : memref<1x128xf32, #tpu.memory_space<vmem>>, vector<1x128xf32>
        %cst_22 = arith.constant 1.250000e-01 : f32
        %36 = vector.broadcast %cst_22 : f32 to vector<1x128xf32>
        %37 = arith.mulf %35, %36 : vector<1x128xf32>
        %38 = arith.mulf %34, %34 : vector<1x128xf32>
        %39 = arith.subf %37, %38 : vector<1x128xf32>
        %cst_23 = arith.constant 0.000000e+00 : f32
        %40 = vector.broadcast %cst_23 : f32 to vector<1x128xf32>
        %41 = arith.maximumf %39, %40 : vector<1x128xf32>
        %cst_24 = arith.constant 9.99999974E-6 : f32
        %42 = vector.broadcast %cst_24 : f32 to vector<1x128xf32>
        %43 = arith.addf %41, %42 : vector<1x128xf32>
        %44 = math.rsqrt %43 : vector<1x128xf32>
        %c0_25 = arith.constant 0 : index
        %c0_26 = arith.constant 0 : index
        %45 = vector.load %arg5[%c0_25, %c0_26] : memref<1x128xf32, #tpu.memory_space<vmem>>, vector<1x128xf32>
        %46 = arith.mulf %45, %44 : vector<1x128xf32>
        %c0_27 = arith.constant 0 : index
        %c0_28 = arith.constant 0 : index
        %47 = vector.load %arg13[%c0_27, %c0_28] : memref<1x128xf32, #tpu.memory_space<vmem>>, vector<1x128xf32>
        tpu.vector_store %arg13[%c0_27, %c0_28], %46 {strides = array<i32>} : memref<1x128xf32, #tpu.memory_space<vmem>>, vector<1x128xf32>,
        %c0_29 = arith.constant 0 : index
        %c0_30 = arith.constant 0 : index
        %48 = vector.load %arg6[%c0_29, %c0_30] : memref<1x128xf32, #tpu.memory_space<vmem>>, vector<1x128xf32>
        %c0_31 = arith.constant 0 : index
        %c0_32 = arith.constant 0 : index
        %49 = vector.load %arg13[%c0_31, %c0_32] : memref<1x128xf32, #tpu.memory_space<vmem>>, vector<1x128xf32>
        %50 = arith.mulf %34, %49 : vector<1x128xf32>
        %51 = arith.subf %48, %50 : vector<1x128xf32>
        %c0_33 = arith.constant 0 : index
        %c0_34 = arith.constant 0 : index
        %52 = vector.load %arg14[%c0_33, %c0_34] : memref<1x128xf32, #tpu.memory_space<vmem>>, vector<1x128xf32>
        tpu.vector_store %arg14[%c0_33, %c0_34], %51 {strides = array<i32>} : memref<1x128xf32, #tpu.memory_space<vmem>>, vector<1x128xf32>,
      } else {
      }
      %9 = arith.index_cast %arg1 : i32 to index
      %c0 = arith.constant 0 : index
      %c0_4 = arith.constant 0 : index
      %10 = vector.load %arg10[%9, %c0, %c0_4] : memref<1x8x128xf32, #tpu.memory_space<vmem>>, vector<1x8x128xf32>
      %11 = vector.shape_cast %10 : vector<1x8x128xf32> to vector<8x128xf32>
      %c0_5 = arith.constant 0 : index
      %c0_6 = arith.constant 0 : index
      %12 = vector.load %arg13[%c0_5, %c0_6] : memref<1x128xf32, #tpu.memory_space<vmem>>, vector<1x128xf32>
      %13 = vector.broadcast %12 : vector<1x128xf32> to vector<8x128xf32>
      %14 = arith.mulf %11, %13 : vector<8x128xf32>
      %c0_7 = arith.constant 0 : index
      %c0_8 = arith.constant 0 : index
      %15 = vector.load %arg14[%c0_7, %c0_8] : memref<1x128xf32, #tpu.memory_space<vmem>>, vector<1x128xf32>
      %16 = vector.broadcast %15 : vector<1x128xf32> to vector<8x128xf32>
      %17 = arith.addf %14, %16 : vector<8x128xf32>
      %c0_9 = arith.constant 0 : index
      %c0_10 = arith.constant 0 : index
      %18 = vector.load %arg7[%c0_9, %c0_10] : memref<128x128xf32, #tpu.memory_space<vmem>>, vector<128x128xf32>
      %cst = arith.constant dense<0.000000e+00> : vector<8x128xf32>
      %19 = tpu.matmul %17, %18, %cst {dimension_numbers = #tpu.dot_dimension_numbers<[1], [0], [0], [1], [0, 0, 1, 1], [], []>} : vector<8x128xf32>, vector<128x128xf32>, vector<8x128xf32> -> vector<8x128xf32>
      %c0_11 = arith.constant 0 : index
      %c0_12 = arith.constant 0 : index
      %20 = vector.load %arg8[%c0_11, %c0_12] : memref<1x128xf32, #tpu.memory_space<vmem>>, vector<1x128xf32>
      %21 = vector.broadcast %20 : vector<1x128xf32> to vector<8x128xf32>
      %22 = arith.addf %19, %21 : vector<8x128xf32>
      %23 = arith.mulf %22, %22 : vector<8x128xf32>
      %cst_13 = arith.constant dense<0.000000e+00> : vector<8xf32>
      %24 = vector.multi_reduction <add>, %23, %cst_13 [1] : vector<8x128xf32> to vector<8xf32>
      %25 = vector.shape_cast %24 : vector<8xf32> to vector<8x1xf32>
      %cst_14 = arith.constant 1.000000e-24 : f32
      %26 = vector.broadcast %cst_14 : f32 to vector<8x1xf32>
      %27 = arith.maximumf %25, %26 : vector<8x1xf32>
      %28 = math.rsqrt %27 : vector<8x1xf32>
      %29 = vector.broadcast %28 : vector<8x1xf32> to vector<8x128xf32>
      %30 = arith.mulf %22, %29 : vector<8x128xf32>
      %c0_15 = arith.constant 0 : index
      %c0_16 = arith.constant 0 : index
      %31 = vector.load %arg9[%c0_15, %c0_16] : memref<8x128xf32, #tpu.memory_space<vmem>>, vector<8x128xf32>
      tpu.vector_store %arg9[%c0_15, %c0_16], %30 {strides = array<i32>} : memref<8x128xf32, #tpu.memory_space<vmem>>, vector<8x128xf32>,
    } else {
    }
    return
  }
  func.func @transform_0(%arg0: i32, %arg1: i32) -> (i32, i32) {
    %c1_i32 = arith.constant 1 : i32
    %0 = arith.subi %c1_i32, %arg0 : i32
    %1 = arith.muli %arg1, %0 : i32
    %c0_i32 = arith.constant 0 : i32
    %c0_i32_0 = arith.constant 0 : i32
    return %1, %c0_i32 : i32, i32
  }
  func.func @transform_1(%arg0: i32, %arg1: i32) -> (i32, i32) {
    %c0_i32 = arith.constant 0 : i32
    %c0_i32_0 = arith.constant 0 : i32
    %c0_i32_1 = arith.constant 0 : i32
    return %c0_i32, %c0_i32_0 : i32, i32
  }
  func.func @transform_2(%arg0: i32, %arg1: i32) -> (i32, i32) {
    %c0_i32 = arith.constant 0 : i32
    %c0_i32_0 = arith.constant 0 : i32
    %c0_i32_1 = arith.constant 0 : i32
    return %c0_i32, %c0_i32_0 : i32, i32
  }
  func.func @transform_3(%arg0: i32, %arg1: i32) -> (i32, i32) {
    %c0_i32 = arith.constant 0 : i32
    %c0_i32_0 = arith.constant 0 : i32
    %c0_i32_1 = arith.constant 0 : i32
    return %c0_i32, %c0_i32_0 : i32, i32
  }
  func.func @transform_4(%arg0: i32, %arg1: i32) -> (i32, i32) {
    %c0_i32 = arith.constant 0 : i32
    %c0_i32_0 = arith.constant 0 : i32
    %c0_i32_1 = arith.constant 0 : i32
    return %c0_i32, %c0_i32_0 : i32, i32
  }
  func.func @transform_5(%arg0: i32, %arg1: i32) -> (i32, i32) {
    %c0_i32 = arith.constant 0 : i32
    %c0_i32_0 = arith.constant 0 : i32
    %c0_i32_1 = arith.constant 0 : i32
    return %c0_i32, %c0_i32_0 : i32, i32
  }
  func.func @transform_6(%arg0: i32, %arg1: i32) -> (i32, i32) {
    %c0_i32 = arith.constant 0 : i32
    %c0_i32_0 = arith.constant 0 : i32
    %c0_i32_1 = arith.constant 0 : i32
    return %c0_i32, %c0_i32_0 : i32, i32
  }
  func.func @transform_7(%arg0: i32, %arg1: i32) -> (i32, i32) {
    %0 = arith.muli %arg1, %arg0 : i32
    %c0_i32 = arith.constant 0 : i32
    %c0_i32_0 = arith.constant 0 : i32
    return %0, %c0_i32 : i32, i32
  }
}

</mosaic_0001>

<llo_original>
// kernel: tpu_custom_call.1
$region0: #{tpu_custom_call.1}
  #allocation0 [shape = 'u32[]', space=smem, size = 0x4, offset = 0x4, fixed_abs, tag = 'smem constant byte address 0x4 - core index']
  #allocation1 [shape = 'u32[144,128]{1,0:T(1,128)}', space=vmem, size = 0x12000, scoped, tag = 'internal scratch']
  #allocation2 [shape = 'f32[1,8,128]{2,1,0:T(8,128)}', space=vmem, size = 0x1000, scoped, tag = 'scratch operand']
  #allocation3 [shape = 'f32[1,128]{1,0:T(1,128)}', space=vmem, size = 0x200, scoped, tag = 'scratch operand']
  #allocation4 [shape = 'f32[1,128]{1,0:T(1,128)}', space=vmem, size = 0x200, scoped, tag = 'scratch operand']
  #allocation5 [shape = 'f32[1,128]{1,0:T(1,128)}', space=vmem, size = 0x200, scoped, tag = 'scratch operand']
  #allocation6 [shape = 'f32[1,128]{1,0:T(1,128)}', space=vmem, size = 0x200, scoped, tag = 'scratch operand']
  %s0 = inlined_call_operand.hbm [shape: f32[8,128], index: 0, kind: input, shape index: {}]
  %s1 = inlined_call_operand.hbm [shape: f32[128,128], index: 1, kind: input, shape index: {}]
  %s2 = inlined_call_operand.vmem [shape: f32[1,128], index: 2, kind: input, shape index: {}]
  %s3 = inlined_call_operand.vmem [shape: f32[1,128], index: 3, kind: input, shape index: {}]
  %s4 = inlined_call_operand.vmem [shape: f32[1,128], index: 4, kind: input, shape index: {}]
  %s5 = inlined_call_operand.hbm [shape: f32[128,128], index: 5, kind: input, shape index: {}]
  %s6 = inlined_call_operand.vmem [shape: f32[1,128], index: 6, kind: input, shape index: {}]
  %s7 = inlined_call_operand.hbm [shape: f32[8,128], index: 7, kind: output, shape index: {}]
  %s8 = sld [smem:[#allocation0]]
  $region93: #{tpu_custom_call.1} parent=0
    _
  %s10 = ssub.s32 1, %s8
  %s11 = scalar_select 0, %s10, %s8
  $region1: #{tpu_custom_call.1} parent=0
    #allocation7 [shape = 'u8[8192]{0}', space=vmem, size = 0x2000, scoped, tag = 'input window, operand 0']
    #allocation8 [shape = 's32[2]{0}', space=sflag, size = 0x8, scoped, tag = 'scoped memory for tpu_custom_call.1']
    #allocation9 [shape = 's32[2]{0}', space=sflag, size = 0x8, scoped, tag = 'scoped memory for tpu_custom_call.1']
    #allocation10 [shape = 'u8[65536]{0}', space=vmem, size = 0x10000, scoped, tag = 'input window, operand 1, single buffered']
    #allocation11 [shape = 's32[1]{0}', space=sflag, size = 0x4, scoped, tag = 'scoped memory for tpu_custom_call.1']
    #allocation12 [shape = 'u8[65536]{0}', space=vmem, size = 0x10000, scoped, tag = 'input window, operand 5, single buffered']
    #allocation13 [shape = 'u8[8192]{0}', space=vmem, size = 0x2000, scoped, tag = 'output window, operand 0']
    %12 = vsyncpa [#allocation8], 0
    %s13 = scalar_lea.sflag [#allocation8], 1
    %14 = vsyncpa %s13, 0
    %15 = vsyncpa [#allocation11], 0
    %16 = vsyncpa [#allocation9], 0
    %s17 = scalar_lea.sflag [#allocation9], 1
    %18 = vsyncpa %s17, 0
    loop: start=0, step=1, limit=4
    $region2: #{tpu_custom_call.1} parent=1 // loop_pre_header
      _
    $region3: #{tpu_custom_call.1} parent=1 // loop_header
      %s20 = sphi 0, %s24
      %p21 = scmp.ge.s32.totalorder %s20, 4
      %s27 = sphi 0, %s39
      %s28 = sphi 0, %s35
      %s29 = sphi 0, %s27
      %s30 = sphi 0, %s28
      %s31 = sphi 0, %s29
      %s32 = sphi 0, %s30
      %s46 = sphi 0, %s48
      %s49 = sphi 0, %s46
      %s50 = sphi 0, %s49
      %s66 = sphi 0, %s50
      %s70 = sphi 0, %s70
      %s72 = sphi 0, %s70
      %s73 = sphi 0, %s72
      %s87 = sphi 0, %s73
      %s91 = sphi 0, %s91
      %s93 = sphi 0, %s91
      %s94 = sphi 0, %s93
      %s108 = sphi 0, %s94
      %s112 = sphi 0, %s112
      %s114 = sphi 0, %s112
      %s115 = sphi 0, %s114
      %s129 = sphi 0, %s115
      %s133 = sphi 0, %s133
      %s135 = sphi 0, %s133
      %s136 = sphi 0, %s135
      %s150 = sphi 0, %s136
      %s154 = sphi 0, %s154
      %s156 = sphi 0, %s154
      %s157 = sphi 0, %s156
      %s171 = sphi 0, %s157
      %s175 = sphi 0, %s175
      %s177 = sphi 0, %s175
      %s178 = sphi 0, %s177
      %s192 = sphi 0, %s178
      %s200 = sphi 0, %s202
      %s203 = sphi 0, %s200
      %s204 = sphi 0, %s203
      %s220 = sphi 0, %s204
    $region4: #{tpu_custom_call.1} parent=1 // loop_header_branch
      %23 = sbr.rel (%p21) target = $region8
    $region5: #{tpu_custom_call.1} parent=1 // loop_body
      %s25 = ssub.s32 %s20, 1
      %s26 = ssub.s32 %s20, 2
      %s33 = sadd.s32 1, %s28
      %p34 = scmp.ge.s32.totalorder %s33, 1
      %s35 = scalar_select %p34, 0, %s33
      %s36 = sadd.s32 1, %s27
      %s37 = scalar_select %p34, %s36, %s27
      %p38 = scmp.ge.s32.totalorder %s37, 2
      %s39 = scalar_select %p38, 0, %s37
      %s40 = ssub.s32 1, %s27
      %s41 = smul.u32 %s28, %s40
      %s42 = ssub.s32 1, %s39
      %s43 = smul.u32 %s35, %s42
      %s44 = ssub.s32 %s41, %s43
      %p45 = scmp.eq.s32.totalorder %s44, 0
      %s47 = sadd.s32 %s46, 1
      %s48 = scalar_select %p45, %s46, %s47
      %p51 = pneg %p45
      %p52 = scmp.eq.s32.totalorder %s20, 1
      %p53 = por %p51, %p52
      %p54 = scmp.ne.s32.totalorder %s46, %s49
      %p55 = scmp.eq.s32.totalorder %s20, 0
      %p56 = por %p54, %p55
      %p57 = scmp.ne.s32.totalorder %s46, %s49
      %p58 = scmp.eq.s32.totalorder %s25, 1
      %p59 = por %p57, %p58
      %p60 = scmp.ne.s32.totalorder %s49, %s50
      %p61 = scmp.eq.s32.totalorder %s25, 0
      %p62 = por %p60, %p61
      %p63 = scmp.ne.s32.totalorder %s49, %s50
      %p64 = scmp.eq.s32.totalorder %s26, 1
      %p65 = por %p63, %p64
      %p67 = scmp.ne.s32.totalorder %s50, %s66
      %p68 = scmp.eq.s32.totalorder %s26, 0
      %p69 = por %p67, %p68
      %s71 = sadd.s32 %s70, 1
      %p74 = scmp.eq.s32.totalorder %s20, 1
      %p75 = scmp.ne.s32.totalorder %s70, %s72
      %p76 = scmp.eq.s32.totalorder %s20, 0
      %p77 = por %p75, %p76
      %p78 = scmp.ne.s32.totalorder %s70, %s72
      %p79 = scmp.eq.s32.totalorder %s25, 1
      %p80 = por %p78, %p79
      %p81 = scmp.ne.s32.totalorder %s72, %s73
      %p82 = scmp.eq.s32.totalorder %s25, 0
      %p83 = por %p81, %p82
      %p84 = scmp.ne.s32.totalorder %s72, %s73
      %p85 = scmp.eq.s32.totalorder %s26, 1
      %p86 = por %p84, %p85
      %p88 = scmp.ne.s32.totalorder %s73, %s87
      %p89 = scmp.eq.s32.totalorder %s26, 0
      %p90 = por %p88, %p89
      %s92 = sadd.s32 %s91, 1
      %p95 = scmp.eq.s32.totalorder %s20, 1
      %p96 = scmp.ne.s32.totalorder %s91, %s93
      %p97 = scmp.eq.s32.totalorder %s20, 0
      %p98 = por %p96, %p97
      %p99 = scmp.ne.s32.totalorder %s91, %s93
      %p100 = scmp.eq.s32.totalorder %s25, 1
      %p101 = por %p99, %p100
      %p102 = scmp.ne.s32.totalorder %s93, %s94
      %p103 = scmp.eq.s32.totalorder %s25, 0
      %p104 = por %p102, %p103
      %p105 = scmp.ne.s32.totalorder %s93, %s94
      %p106 = scmp.eq.s32.totalorder %s26, 1
      %p107 = por %p105, %p106
      %p109 = scmp.ne.s32.totalorder %s94, %s108
      %p110 = scmp.eq.s32.totalorder %s26, 0
      %p111 = por %p109, %p110
      %s113 = sadd.s32 %s112, 1
      %p116 = scmp.eq.s32.totalorder %s20, 1
      %p117 = scmp.ne.s32.totalorder %s112, %s114
      %p118 = scmp.eq.s32.totalorder %s20, 0
      %p119 = por %p117, %p118
      %p120 = scmp.ne.s32.totalorder %s112, %s114
      %p121 = scmp.eq.s32.totalorder %s25, 1
      %p122 = por %p120, %p121
      %p123 = scmp.ne.s32.totalorder %s114, %s115
      %p124 = scmp.eq.s32.totalorder %s25, 0
      %p125 = por %p123, %p124
      %p126 = scmp.ne.s32.totalorder %s114, %s115
      %p127 = scmp.eq.s32.totalorder %s26, 1
      %p128 = por %p126, %p127
      %p130 = scmp.ne.s32.totalorder %s115, %s129
      %p131 = scmp.eq.s32.totalorder %s26, 0
      %p132 = por %p130, %p131
      %s134 = sadd.s32 %s133, 1
      %p137 = scmp.eq.s32.totalorder %s20, 1
      %p138 = scmp.ne.s32.totalorder %s133, %s135
      %p139 = scmp.eq.s32.totalorder %s20, 0
      %p140 = por %p138, %p139
      %p141 = scmp.ne.s32.totalorder %s133, %s135
      %p142 = scmp.eq.s32.totalorder %s25, 1
      %p143 = por %p141, %p142
      %p144 = scmp.ne.s32.totalorder %s135, %s136
      %p145 = scmp.eq.s32.totalorder %s25, 0
      %p146 = por %p144, %p145
      %p147 = scmp.ne.s32.totalorder %s135, %s136
      %p148 = scmp.eq.s32.totalorder %s26, 1
      %p149 = por %p147, %p148
      %p151 = scmp.ne.s32.totalorder %s136, %s150
      %p152 = scmp.eq.s32.totalorder %s26, 0
      %p153 = por %p151, %p152
      %s155 = sadd.s32 %s154, 1
      %p158 = scmp.eq.s32.totalorder %s20, 1
      %p159 = scmp.ne.s32.totalorder %s154, %s156
      %p160 = scmp.eq.s32.totalorder %s20, 0
      %p161 = por %p159, %p160
      %p162 = scmp.ne.s32.totalorder %s154, %s156
      %p163 = scmp.eq.s32.totalorder %s25, 1
      %p164 = por %p162, %p163
      %p165 = scmp.ne.s32.totalorder %s156, %s157
      %p166 = scmp.eq.s32.totalorder %s25, 0
      %p167 = por %p165, %p166
      %p168 = scmp.ne.s32.totalorder %s156, %s157
      %p169 = scmp.eq.s32.totalorder %s26, 1
      %p170 = por %p168, %p169
      %p172 = scmp.ne.s32.totalorder %s157, %s171
      %p173 = scmp.eq.s32.totalorder %s26, 0
      %p174 = por %p172, %p173
      %s176 = sadd.s32 %s175, 1
      %p179 = scmp.eq.s32.totalorder %s20, 1
      %p180 = scmp.ne.s32.totalorder %s175, %s177
      %p181 = scmp.eq.s32.totalorder %s20, 0
      %p182 = por %p180, %p181
      %p183 = scmp.ne.s32.totalorder %s175, %s177
      %p184 = scmp.eq.s32.totalorder %s25, 1
      %p185 = por %p183, %p184
      %p186 = scmp.ne.s32.totalorder %s177, %s178
      %p187 = scmp.eq.s32.totalorder %s25, 0
      %p188 = por %p186, %p187
      %p189 = scmp.ne.s32.totalorder %s177, %s178
      %p190 = scmp.eq.s32.totalorder %s26, 1
      %p191 = por %p189, %p190
      %p193 = scmp.ne.s32.totalorder %s178, %s192
      %p194 = scmp.eq.s32.totalorder %s26, 0
      %p195 = por %p193, %p194
      %s196 = smul.u32 %s28, %s27
      %s197 = smul.u32 %s35, %s39
      %s198 = ssub.s32 %s196, %s197
      %p199 = scmp.eq.s32.totalorder %s198, 0
      %s201 = sadd.s32 %s200, 1
      %s202 = scalar_select %p199, %s200, %s201
      %p205 = pneg %p199
      %p206 = scmp.eq.s32.totalorder %s20, 1
      %p207 = por %p205, %p206
      %p208 = scmp.ne.s32.totalorder %s200, %s203
      %p209 = scmp.eq.s32.totalorder %s20, 0
      %p210 = por %p208, %p209
      %p211 = scmp.ne.s32.totalorder %s200, %s203
      %p212 = scmp.eq.s32.totalorder %s25, 1
      %p213 = por %p211, %p212
      %p214 = scmp.ne.s32.totalorder %s203, %s204
      %p215 = scmp.eq.s32.totalorder %s25, 0
      %p216 = por %p214, %p215
      %p217 = scmp.ne.s32.totalorder %s203, %s204
      %p218 = scmp.eq.s32.totalorder %s26, 1
      %p219 = por %p217, %p218
      %p221 = scmp.ne.s32.totalorder %s204, %s220
      %p222 = scmp.eq.s32.totalorder %s26, 0
      %p223 = por %p221, %p222
      %p224 = scmp.le.s32.totalorder 1, %s20
      %p225 = scmp.lt.s32.totalorder %s20, 3
      %p226 = pnand %p224, %p225
      %p227 = pneg %p226
      // Predicated region
      $region9: #{tpu_custom_call.1} parent=5 // pred_check
        _
      $region10: #{tpu_custom_call.1} parent=5 // pred_check_branch
        %229 = sbr.rel (%p226) target = $region12
      $region11: #{tpu_custom_call.1} parent=5 // pred_region
        %s230 = ssub.s32 %s20, 1
        // Predicated region
        $region13: #{tpu_custom_call.1} parent=11 // pred_check
          %p231 = pneg %p83
        $region14: #{tpu_custom_call.1} parent=11 // pred_check_branch
          %233 = sbr.rel (%p231) target = $region16
        $region15: #{tpu_custom_call.1} parent=11 // pred_region
          %s235 = ssub.s32 2048, 2048
          %236 = vsyncadd [#allocation11], %s235
          %s237 = sshll.u32 [#allocation10], 4
          %s238 = int_to_ptr.vmem [resolvable:$true] %s237
          %243 = dma.hbm_to_vmem [thread:$0]  %s1, 2048, %s238, [#allocation11], 128, 128, 8
        $region16: #{tpu_custom_call.1} parent=11 // pred_fallthru
          _
        // Predicated region
        $region17: #{tpu_custom_call.1} parent=11 // pred_check
          %p244 = pneg %p104
        $region18: #{tpu_custom_call.1} parent=11 // pred_check_branch
          %246 = sbr.rel (%p244) target = $region20
        $region19: #{tpu_custom_call.1} parent=11 // pred_region
          _
        $region20: #{tpu_custom_call.1} parent=11 // pred_fallthru
          _
        // Predicated region
        $region21: #{tpu_custom_call.1} parent=11 // pred_check
          %p247 = pneg %p125
        $region22: #{tpu_custom_call.1} parent=11 // pred_check_branch
          %249 = sbr.rel (%p247) target = $region24
        $region23: #{tpu_custom_call.1} parent=11 // pred_region
          _
        $region24: #{tpu_custom_call.1} parent=11 // pred_fallthru
          _
        // Predicated region
        $region25: #{tpu_custom_call.1} parent=11 // pred_check
          %p250 = pneg %p146
        $region26: #{tpu_custom_call.1} parent=11 // pred_check_branch
          %252 = sbr.rel (%p250) target = $region28
        $region27: #{tpu_custom_call.1} parent=11 // pred_region
          _
        $region28: #{tpu_custom_call.1} parent=11 // pred_fallthru
          _
        // Predicated region
        $region29: #{tpu_custom_call.1} parent=11 // pred_check
          %p253 = pneg %p167
        $region30: #{tpu_custom_call.1} parent=11 // pred_check_branch
          %255 = sbr.rel (%p253) target = $region32
        $region31: #{tpu_custom_call.1} parent=11 // pred_region
          %s257 = ssub.s32 2048, 2048
          %258 = vsyncadd [#allocation11], %s257
          %s259 = sshll.u32 [#allocation12], 4
          %s260 = int_to_ptr.vmem [resolvable:$true] %s259
          %265 = dma.hbm_to_vmem [thread:$0]  %s5, 2048, %s260, [#allocation11], 128, 128, 8
        $region32: #{tpu_custom_call.1} parent=11 // pred_fallthru
          _
        // Predicated region
        $region33: #{tpu_custom_call.1} parent=11 // pred_check
          %p266 = pneg %p188
        $region34: #{tpu_custom_call.1} parent=11 // pred_check_branch
          %268 = sbr.rel (%p266) target = $region36
        $region35: #{tpu_custom_call.1} parent=11 // pred_region
          _
        $region36: #{tpu_custom_call.1} parent=11 // pred_fallthru
          _
      $region12: #{tpu_custom_call.1} parent=5 // pred_fallthru
        _
      %p269 = scmp.lt.s32.totalorder %s20, 2
      // Predicated region
      $region37: #{tpu_custom_call.1} parent=5 // pred_check
        %p270 = pneg %p269
      $region38: #{tpu_custom_call.1} parent=5 // pred_check_branch
        %272 = sbr.rel (%p270) target = $region40
      $region39: #{tpu_custom_call.1} parent=5 // pred_region
        // Predicated region
        $region41: #{tpu_custom_call.1} parent=39 // pred_check
          %p273 = pneg %p56
        $region42: #{tpu_custom_call.1} parent=39 // pred_check_branch
          %275 = sbr.rel (%p273) target = $region44
        $region43: #{tpu_custom_call.1} parent=39 // pred_region
          %s276 = sand.u32 %s46, 1
          %s277 = scalar_lea.sflag [#allocation8], %s276
          %s278 = sand.u32 %s46, 1
          %s279 = smul.addr %s278, 8
          %s280 = scalar_lea.vmem [#allocation7], %s279
          %s281 = ssub.s32 1, %s27
          %s282 = smul.u32 %s28, %s281
          %s284 = ssub.s32 128, 128
          %285 = vsyncadd %s277, %s284
          %s286 = smul.addr %s282, 128
          %s287 = scalar_lea.hbm %s0, %s286
          %s289 = sshll.u32 %s280, 4
          %s290 = int_to_ptr.vmem [resolvable:$true] %s289
          %292 = dma.hbm_to_vmem [thread:$0]  %s287, 128, %s290, %s277
        $region44: #{tpu_custom_call.1} parent=39 // pred_fallthru
          _
      $region40: #{tpu_custom_call.1} parent=5 // pred_fallthru
        _
      %p293 = scmp.le.s32.totalorder 1, %s20
      %p294 = scmp.lt.s32.totalorder %s20, 3
      %p295 = pnand %p293, %p294
      %p296 = pneg %p295
      // Predicated region
      $region45: #{tpu_custom_call.1} parent=5 // pred_check
        _
      $region46: #{tpu_custom_call.1} parent=5 // pred_check_branch
        %298 = sbr.rel (%p295) target = $region48
      $region47: #{tpu_custom_call.1} parent=5 // pred_region
        %s299 = ssub.s32 %s20, 1
        %s300 = sand.u32 %s49, 1
        %s301 = scalar_lea.sflag [#allocation8], %s300
        %s302 = sand.u32 %s49, 1
        %s303 = smul.addr %s302, 8
        %s304 = scalar_lea.vmem [#allocation7], %s303
        // Predicated region
        $region49: #{tpu_custom_call.1} parent=47 // pred_check
          %p305 = pneg %p62
        $region50: #{tpu_custom_call.1} parent=47 // pred_check_branch
          %307 = sbr.rel (%p305) target = $region52
        $region51: #{tpu_custom_call.1} parent=47 // pred_region
          %308 = dma.done %s301, 128
        $region52: #{tpu_custom_call.1} parent=47 // pred_fallthru
          _
        // Predicated region
        $region53: #{tpu_custom_call.1} parent=47 // pred_check
          %p309 = pneg %p83
        $region54: #{tpu_custom_call.1} parent=47 // pred_check_branch
          %311 = sbr.rel (%p309) target = $region56
        $region55: #{tpu_custom_call.1} parent=47 // pred_region
          %312 = dma.done [#allocation11], 2048
        $region56: #{tpu_custom_call.1} parent=47 // pred_fallthru
          _
        // Predicated region
        $region57: #{tpu_custom_call.1} parent=47 // pred_check
          %p313 = pneg %p167
        $region58: #{tpu_custom_call.1} parent=47 // pred_check_branch
          %315 = sbr.rel (%p313) target = $region60
        $region59: #{tpu_custom_call.1} parent=47 // pred_region
          %316 = dma.done [#allocation11], 2048
        $region60: #{tpu_custom_call.1} parent=47 // pred_fallthru
          _
        %s317 = sand.u32 %s49, 1
        %s318 = scalar_lea.sflag [#allocation8], %s317
        %s319 = sand.u32 %s49, 1
        %s320 = smul.addr %s319, 8
        %s321 = scalar_lea.vmem [#allocation7], %s320
        %p322 = pneg %p62
        %p323 = pneg %p59
        %p324 = pneg %p83
        %p325 = pneg %p80
        %p326 = pneg %p104
        %p327 = pneg %p101
        %p328 = pneg %p125
        %p329 = pneg %p122
        %p330 = pneg %p146
        %p331 = pneg %p143
        %p332 = pneg %p167
        %p333 = pneg %p164
        %p334 = pneg %p188
        %p335 = pneg %p185
        %p336 = pneg %p216
        %p337 = pneg %p213
        %s338 = sand.u32 %s203, 1
        %s339 = scalar_lea.sflag [#allocation9], %s338
        %s340 = sand.u32 %s203, 1
        %s341 = smul.addr %s340, 8
        %s342 = scalar_lea.vmem [#allocation13], %s341
        %s343 = ssub.s32 1, %s29
        %s344 = smul.u32 %s30, %s343
        %s345 = smul.u32 %s30, %s29
        %p346 = scmp.eq.s32.totalorder %s29, 0
        // Predicated region
        $region61: #{tpu_custom_call.1} parent=47 // pred_check
          %p347 = pneg %p346
        $region62: #{tpu_custom_call.1} parent=47 // pred_check_branch
          %349 = sbr.rel (%p347) target = $region64
        $region63: #{tpu_custom_call.1} parent=47 // pred_region
          %v350 = vld [vmem:[%s304] sm:$0xff]
          %v351 = vld [vmem:[#allocation10] sm:$0xff]
          %v352 = vld [vmem:[#allocation10 + $0x8] sm:$0xff]
          %v353 = vld [vmem:[#allocation10 + $0x10] sm:$0xff]
          %v354 = vld [vmem:[#allocation10 + $0x18] sm:$0xff]
          %v355 = vld [vmem:[#allocation10 + $0x20] sm:$0xff]
          %v356 = vld [vmem:[#allocation10 + $0x28] sm:$0xff]
          %v357 = vld [vmem:[#allocation10 + $0x30] sm:$0xff]
          %v358 = vld [vmem:[#allocation10 + $0x38] sm:$0xff]
          %v359 = vld [vmem:[#allocation10 + $0x40] sm:$0xff]
          %v360 = vld [vmem:[#allocation10 + $0x48] sm:$0xff]
          %v361 = vld [vmem:[#allocation10 + $0x50] sm:$0xff]
          %v362 = vld [vmem:[#allocation10 + $0x58] sm:$0xff]
          %v363 = vld [vmem:[#allocation10 + $0x60] sm:$0xff]
          %v364 = vld [vmem:[#allocation10 + $0x68] sm:$0xff]
          %v365 = vld [vmem:[#allocation10 + $0x70] sm:$0xff]
          %v366 = vld [vmem:[#allocation10 + $0x78] sm:$0xff]
          %v367 = vld [vmem:[%s2] sm:$0x1]
          %v369 = vlaneseq
          %v370 = vshrl.u32 %v369, 7
          %v371 = vsub.s32 0, %v370
          %v372 = vrot.slane %v367, %v371
          %374 = vmatprep.subr.mxu0 0.0
          %375 = vmatpush1.msra.mxu0 %v351
          %376 = vmatprep.subr.mxu0 0.0
          %377 = vmatpush1.msra.mxu0 %v352
          %378 = vmatprep.subr.mxu0 0.0
          %379 = vmatpush1.msra.mxu0 %v353
          %380 = vmatprep.subr.mxu0 0.0
          %381 = vmatpush1.msra.mxu0 %v354
          %382 = vmatprep.subr.mxu0 0.0
          %383 = vmatpush1.msra.mxu0 %v355
          %384 = vmatprep.subr.mxu0 0.0
          %385 = vmatpush1.msra.mxu0 %v356
          %386 = vmatprep.subr.mxu0 0.0
          %387 = vmatpush1.msra.mxu0 %v357
          %388 = vmatprep.subr.mxu0 0.0
          %389 = vmatpush1.msra.mxu0 %v358
          %390 = vmatprep.subr.mxu0 0.0
          %391 = vmatpush1.msra.mxu0 %v359
          %392 = vmatprep.subr.mxu0 0.0
          %393 = vmatpush1.msra.mxu0 %v360
          %394 = vmatprep.subr.mxu0 0.0
          %395 = vmatpush1.msra.mxu0 %v361
          %396 = vmatprep.subr.mxu0 0.0
          %397 = vmatpush1.msra.mxu0 %v362
          %398 = vmatprep.subr.mxu0 0.0
          %399 = vmatpush1.msra.mxu0 %v363
          %400 = vmatprep.subr.mxu0 0.0
          %401 = vmatpush1.msra.mxu0 %v364
          %402 = vmatprep.subr.mxu0 0.0
          %403 = vmatpush1.msra.mxu0 %v365
          %404 = vmatprep.subr.mxu0 0.0
          %405 = vmatpush1.msra.mxu0 %v366
          %406 = vmatprep.subr.mxu0 0.0
          %407 = vmatpush1.msra.mxu0 0.0
          %408 = vmatprep.subr.mxu0 0.0
          %409 = vmatpush1.msra.mxu0 0.0
          %410 = vmatprep.subr.mxu0 0.0
          %411 = vmatpush1.msra.mxu0 0.0
          %412 = vmatprep.subr.mxu0 0.0
          %413 = vmatpush1.msra.mxu0 0.0
          %414 = vmatprep.subr.mxu0 0.0
          %415 = vmatpush1.msra.mxu0 0.0
          %416 = vmatprep.subr.mxu0 0.0
          %417 = vmatpush1.msra.mxu0 0.0
          %418 = vmatprep.subr.mxu0 0.0
          %419 = vmatpush1.msra.mxu0 0.0
          %420 = vmatprep.subr.mxu0 0.0
          %421 = vmatpush1.msra.mxu0 0.0
          %422 = vmatprep.subr.mxu0 0.0
          %423 = vmatpush1.msra.mxu0 0.0
          %424 = vmatprep.subr.mxu0 0.0
          %425 = vmatpush1.msra.mxu0 0.0
          %426 = vmatprep.subr.mxu0 0.0
          %427 = vmatpush1.msra.mxu0 0.0
          %428 = vmatprep.subr.mxu0 0.0
          %429 = vmatpush1.msra.mxu0 0.0
          %430 = vmatprep.subr.mxu0 0.0
          %431 = vmatpush1.msra.mxu0 0.0
          %432 = vmatprep.subr.mxu0 0.0
          %433 = vmatpush1.msra.mxu0 0.0
          %434 = vmatprep.subr.mxu0 0.0
          %435 = vmatpush1.msra.mxu0 0.0
          %436 = vmatprep.subr.mxu0 0.0
          %437 = vmatpush1.msra.mxu0 0.0
          %438 = vmatprep.mubr.f32.mxu0 0.0
          %439 = vmatmul.mubr.f32.gmra.mrb[0].mxu0 %v350
          %v440 = vpop.f32.mrb[0].mxu0
          %v441 = vadd.f32 %v372, %v440
          %v442 = vpop.f32.mrb[0].mxu0
          %443 = vdwg.mxu0
          %v444 = vmax.f32 %v441, 0.0
          %s445 = smul.u32 %s30, 8
          %s446 = scalar_lea.vmem [#allocation2], %s445
          %447 = vst [vmem:[%s446] sm:$0xff] %v444
          %v448 = vrot.slane %v444, 4
          %v449 = vadd.f32 %v444, %v448
          %v450 = vrot.slane %v449, 2
          %v451 = vadd.f32 %v449, %v450
          %v452 = vrot.slane %v451, 1
          %v453 = vadd.f32 %v451, %v452
          %v454 = vmul.f32 %v444, %v444
          %v455 = vrot.slane %v454, 4
          %v456 = vadd.f32 %v454, %v455
          %v457 = vrot.slane %v456, 2
          %v458 = vadd.f32 %v456, %v457
          %v459 = vrot.slane %v458, 1
          %v460 = vadd.f32 %v458, %v459
          %p461 = scmp.eq.s32.totalorder %s30, 0
          // Predicated region
          $region65: #{tpu_custom_call.1} parent=63 // pred_check
            %p462 = pneg %p461
          $region66: #{tpu_custom_call.1} parent=63 // pred_check_branch
            %464 = sbr.rel (%p462) target = $region68
          $region67: #{tpu_custom_call.1} parent=63 // pred_region
            %465 = vst [vmem:[#allocation3] sm:$0x1] %v453
            %466 = vst [vmem:[#allocation4] sm:$0x1] %v460
          $region68: #{tpu_custom_call.1} parent=63 // pred_fallthru
            _
          %p467 = scmp.ne.s32.totalorder %s30, 0
          // Predicated region
          $region69: #{tpu_custom_call.1} parent=63 // pred_check
            %p468 = pneg %p467
          $region70: #{tpu_custom_call.1} parent=63 // pred_check_branch
            %470 = sbr.rel (%p468) target = $region72
          $region71: #{tpu_custom_call.1} parent=63 // pred_region
            %v471 = vld [vmem:[#allocation3] sm:$0x1]
            %v472 = vadd.f32 %v471, %v453
            %473 = vst [vmem:[#allocation3] sm:$0x1] %v472
            %v474 = vld [vmem:[#allocation4] sm:$0x1]
            %v475 = vadd.f32 %v474, %v460
            %476 = vst [vmem:[#allocation4] sm:$0x1] %v475
          $region72: #{tpu_custom_call.1} parent=63 // pred_fallthru
            _
        $region64: #{tpu_custom_call.1} parent=47 // pred_fallthru
          _
        %p477 = scmp.eq.s32.totalorder %s29, 1
        // Predicated region
        $region73: #{tpu_custom_call.1} parent=47 // pred_check
          %p478 = pneg %p477
        $region74: #{tpu_custom_call.1} parent=47 // pred_check_branch
          %480 = sbr.rel (%p478) target = $region76
        $region75: #{tpu_custom_call.1} parent=47 // pred_region
          %p481 = scmp.eq.s32.totalorder %s30, 0
          // Predicated region
          $region77: #{tpu_custom_call.1} parent=75 // pred_check
            %p482 = pneg %p481
          $region78: #{tpu_custom_call.1} parent=75 // pred_check_branch
            %484 = sbr.rel (%p482) target = $region80
          $region79: #{tpu_custom_call.1} parent=75 // pred_region
            %v485 = vld [vmem:[#allocation3] sm:$0x1]
            %v486 = vmul.f32 %v485, 0.125
            %v487 = vld [vmem:[#allocation4] sm:$0x1]
            %v488 = vmul.f32 %v487, 0.125
            %v489 = vmul.f32 %v486, %v486
            %v490 = vsub.f32 %v488, %v489
            %v491 = vmax.f32 %v490, 0.0
            %v492 = vadd.f32 %v491, 1e-05
            %v493 = vrsqrt.pop %v492
            %v494 = vld [vmem:[%s3] sm:$0x1]
            %v495 = vmul.f32 %v494, %v493
            %496 = vst [vmem:[#allocation5] sm:$0x1] %v495
            %v497 = vld [vmem:[%s4] sm:$0x1]
            %v498 = vld [vmem:[#allocation5] sm:$0x1]
            %v499 = vmul.f32 %v486, %v498
            %v500 = vsub.f32 %v497, %v499
            %501 = vst [vmem:[#allocation6] sm:$0x1] %v500
          $region80: #{tpu_custom_call.1} parent=75 // pred_fallthru
            _
          %s502 = smul.u32 %s30, 8
          %s503 = scalar_lea.vmem [#allocation2], %s502
          %v504 = vld [vmem:[%s503] sm:$0xff]
          %v505 = vld [vmem:[#allocation5] sm:$0x1]
          %v507 = vlaneseq
          %v508 = vshrl.u32 %v507, 7
          %v509 = vsub.s32 0, %v508
          %v510 = vrot.slane %v505, %v509
          %v512 = vmul.f32 %v504, %v510
          %v513 = vld [vmem:[#allocation6] sm:$0x1]
          %v515 = vlaneseq
          %v516 = vshrl.u32 %v515, 7
          %v517 = vsub.s32 0, %v516
          %v518 = vrot.slane %v513, %v517
          %v520 = vadd.f32 %v512, %v518
          %v521 = vld [vmem:[#allocation12] sm:$0xff]
          %v522 = vld [vmem:[#allocation12 + $0x8] sm:$0xff]
          %v523 = vld [vmem:[#allocation12 + $0x10] sm:$0xff]
          %v524 = vld [vmem:[#allocation12 + $0x18] sm:$0xff]
          %v525 = vld [vmem:[#allocation12 + $0x20] sm:$0xff]
          %v526 = vld [vmem:[#allocation12 + $0x28] sm:$0xff]
          %v527 = vld [vmem:[#allocation12 + $0x30] sm:$0xff]
          %v528 = vld [vmem:[#allocation12 + $0x38] sm:$0xff]
          %v529 = vld [vmem:[#allocation12 + $0x40] sm:$0xff]
          %v530 = vld [vmem:[#allocation12 + $0x48] sm:$0xff]
          %v531 = vld [vmem:[#allocation12 + $0x50] sm:$0xff]
          %v532 = vld [vmem:[#allocation12 + $0x58] sm:$0xff]
          %v533 = vld [vmem:[#allocation12 + $0x60] sm:$0xff]
          %v534 = vld [vmem:[#allocation12 + $0x68] sm:$0xff]
          %v535 = vld [vmem:[#allocation12 + $0x70] sm:$0xff]
          %v536 = vld [vmem:[#allocation12 + $0x78] sm:$0xff]
          %v537 = vld [vmem:[%s6] sm:$0x1]
          %v539 = vlaneseq
          %v540 = vshrl.u32 %v539, 7
          %v541 = vsub.s32 0, %v540
          %v542 = vrot.slane %v537, %v541
          %544 = vmatprep.subr.mxu0 0.0
          %545 = vmatpush1.msra.mxu0 %v521
          %546 = vmatprep.subr.mxu0 0.0
          %547 = vmatpush1.msra.mxu0 %v522
          %548 = vmatprep.subr.mxu0 0.0
          %549 = vmatpush1.msra.mxu0 %v523
          %550 = vmatprep.subr.mxu0 0.0
          %551 = vmatpush1.msra.mxu0 %v524
          %552 = vmatprep.subr.mxu0 0.0
          %553 = vmatpush1.msra.mxu0 %v525
          %554 = vmatprep.subr.mxu0 0.0
          %555 = vmatpush1.msra.mxu0 %v526
          %556 = vmatprep.subr.mxu0 0.0
          %557 = vmatpush1.msra.mxu0 %v527
          %558 = vmatprep.subr.mxu0 0.0
          %559 = vmatpush1.msra.mxu0 %v528
          %560 = vmatprep.subr.mxu0 0.0
          %561 = vmatpush1.msra.mxu0 %v529
          %562 = vmatprep.subr.mxu0 0.0
          %563 = vmatpush1.msra.mxu0 %v530
          %564 = vmatprep.subr.mxu0 0.0
          %565 = vmatpush1.msra.mxu0 %v531
          %566 = vmatprep.subr.mxu0 0.0
          %567 = vmatpush1.msra.mxu0 %v532
          %568 = vmatprep.subr.mxu0 0.0
          %569 = vmatpush1.msra.mxu0 %v533
          %570 = vmatprep.subr.mxu0 0.0
          %571 = vmatpush1.msra.mxu0 %v534
          %572 = vmatprep.subr.mxu0 0.0
          %573 = vmatpush1.msra.mxu0 %v535
          %574 = vmatprep.subr.mxu0 0.0
          %575 = vmatpush1.msra.mxu0 %v536
          %576 = vmatprep.subr.mxu0 0.0
          %577 = vmatpush1.msra.mxu0 0.0
          %578 = vmatprep.subr.mxu0 0.0
          %579 = vmatpush1.msra.mxu0 0.0
          %580 = vmatprep.subr.mxu0 0.0
          %581 = vmatpush1.msra.mxu0 0.0
          %582 = vmatprep.subr.mxu0 0.0
          %583 = vmatpush1.msra.mxu0 0.0
          %584 = vmatprep.subr.mxu0 0.0
          %585 = vmatpush1.msra.mxu0 0.0
          %586 = vmatprep.subr.mxu0 0.0
          %587 = vmatpush1.msra.mxu0 0.0
          %588 = vmatprep.subr.mxu0 0.0
          %589 = vmatpush1.msra.mxu0 0.0
          %590 = vmatprep.subr.mxu0 0.0
          %591 = vmatpush1.msra.mxu0 0.0
          %592 = vmatprep.subr.mxu0 0.0
          %593 = vmatpush1.msra.mxu0 0.0
          %594 = vmatprep.subr.mxu0 0.0
          %595 = vmatpush1.msra.mxu0 0.0
          %596 = vmatprep.subr.mxu0 0.0
          %597 = vmatpush1.msra.mxu0 0.0
          %598 = vmatprep.subr.mxu0 0.0
          %599 = vmatpush1.msra.mxu0 0.0
          %600 = vmatprep.subr.mxu0 0.0
          %601 = vmatpush1.msra.mxu0 0.0
          %602 = vmatprep.subr.mxu0 0.0
          %603 = vmatpush1.msra.mxu0 0.0
          %604 = vmatprep.subr.mxu0 0.0
          %605 = vmatpush1.msra.mxu0 0.0
          %606 = vmatprep.subr.mxu0 0.0
          %607 = vmatpush1.msra.mxu0 0.0
          %608 = vmatprep.mubr.f32.mxu0 0.0
          %609 = vmatmul.mubr.f32.gmra.mrb[0].mxu0 %v520
          %v610 = vpop.f32.mrb[0].mxu0
          %v611 = vadd.f32 %v542, %v610
          %v612 = vpop.f32.mrb[0].mxu0
          %613 = vdwg.mxu0
          %v614 = vmul.f32 %v611, %v611
          %615 = vadd.xlane.f32.xlu0 %v614
          %v616 = vpop.xlane.xlu0 %615
          %v617 = vmax.f32 %v616, 1e-24
          %v618 = vrsqrt.pop %v617
          %v619 = vmul.f32 %v611, %v618
          %620 = vst [vmem:[%s342] sm:$0xff] %v619
        $region76: #{tpu_custom_call.1} parent=47 // pred_fallthru
          _
        %s621 = sand.u32 %s203, 1
        %s622 = scalar_lea.sflag [#allocation9], %s621
        %s623 = sand.u32 %s203, 1
        %s624 = smul.addr %s623, 8
        %s625 = scalar_lea.vmem [#allocation13], %s624
        // Predicated region
        $region81: #{tpu_custom_call.1} parent=47 // pred_check
          %p626 = pneg %p213
        $region82: #{tpu_custom_call.1} parent=47 // pred_check_branch
          %628 = sbr.rel (%p626) target = $region84
        $region83: #{tpu_custom_call.1} parent=47 // pred_region
          %s629 = smul.u32 %s30, %s29
          %s631 = ssub.s32 128, 128
          %632 = vsyncadd %s622, %s631
          %s633 = smul.addr %s629, 128
          %s634 = scalar_lea.hbm %s7, %s633
          %s636 = sshll.u32 %s625, 4
          %s637 = int_to_ptr.vmem [resolvable:$true] %s636
          %639 = dma.vmem_to_hbm [thread:$0]  %s637, 128, %s634, %s622
        $region84: #{tpu_custom_call.1} parent=47 // pred_fallthru
          _
      $region48: #{tpu_custom_call.1} parent=5 // pred_fallthru
        _
      %p640 = scmp.le.s32.totalorder 2, %s20
      // Predicated region
      $region85: #{tpu_custom_call.1} parent=5 // pred_check
        %p641 = pneg %p640
      $region86: #{tpu_custom_call.1} parent=5 // pred_check_branch
        %643 = sbr.rel (%p641) target = $region88
      $region87: #{tpu_custom_call.1} parent=5 // pred_region
        %s644 = ssub.s32 %s20, 2
        // Predicated region
        $region89: #{tpu_custom_call.1} parent=87 // pred_check
          %p645 = pneg %p219
        $region90: #{tpu_custom_call.1} parent=87 // pred_check_branch
          %647 = sbr.rel (%p645) target = $region92
        $region91: #{tpu_custom_call.1} parent=87 // pred_region
          %s648 = sand.u32 %s204, 1
          %s649 = scalar_lea.sflag [#allocation9], %s648
          %s650 = sand.u32 %s204, 1
          %s651 = smul.addr %s650, 8
          %s652 = scalar_lea.vmem [#allocation13], %s651
          %653 = dma.done %s649, 128
        $region92: #{tpu_custom_call.1} parent=87 // pred_fallthru
          _
      $region88: #{tpu_custom_call.1} parent=5 // pred_fallthru
        _
    $region6: #{tpu_custom_call.1} parent=1 // loop_footer
      %s24 = sadd.s32 1, %s20
    $region7: #{tpu_custom_call.1} parent=1 // loop_footer_branch
      %19 = sbr.rel target = $region3
    $region8: #{tpu_custom_call.1} parent=1 // loop_exit
      _
    %654 = vsyncpa [#allocation8], 1
    %s655 = scalar_lea.sflag [#allocation8], 1
    %656 = vsyncpa %s655, 1
    %657 = vsyncpa [#allocation11], 1
    %658 = vsyncpa [#allocation9], 1
    %s659 = scalar_lea.sflag [#allocation9], 1
    %660 = vsyncpa %s659, 1

</llo_original>
